<compile_context>
chip_gen: v7x
topology: tpu7x:2x2x1
jax: 0.10.0
libtpu: 0.0.40
codegen_flags: <defaults>
</compile_context>

<pallas_src>
import jax
import jax.numpy as jnp
from jax.experimental import pallas as pl
from jax.experimental.pallas import tpu as pltpu

IN_FEATURES = 1000
OUT_FEATURES = 10
N_PAD = 128   # OUT_FEATURES padded to one full lane (lane-dense, unmasked stores)


def _round_up(x, m):
    return ((x + m - 1) // m) * m


def linear_kernel(x_ref, w_ref, b_ref, o_ref):
    # x_ref: (TM, 1000) f32 (streamed)   w_ref: (1000, 128) bf16 (VMEM-resident)
    # b_ref: (1, 128) f32 (resident)     o_ref: (TM, 128) f32
    x_bf16 = x_ref[...].astype(jnp.bfloat16)   # in-kernel cast: no extra HBM pass
    acc = jnp.dot(x_bf16, w_ref[...], preferred_element_type=jnp.float32)
    o_ref[...] = acc + b_ref[...]


def linear_pallas(x, w_pad_bf16, b_pad_f32, tm_max=1024):
    """x: (B, IN_FEATURES) f32. Returns (B, OUT_FEATURES) f32."""
    B = x.shape[0]

    # Pad the batch only up to a sublane multiple (no-op when B % 8 == 0).
    B_pad = _round_up(B, 8)
    if B_pad != B:
        x = jnp.pad(x, ((0, B_pad - B), (0, 0)))

    # Batch tile: large for long contiguous DMAs, but guarantee >=2 grid steps
    # when possible so v7x can use both TensorCores (harmless on v5e/v6e).
    if B_pad > 8:
        TM = min(tm_max, _round_up(pl.cdiv(B_pad, 2), 8))
    else:
        TM = B_pad
    grid = (pl.cdiv(B_pad, TM),)

    cost = pl.CostEstimate(
        flops=2 * B_pad * IN_FEATURES * N_PAD,
        transcendentals=0,
        bytes_accessed=(B_pad * IN_FEATURES * 4          # x read
                        + IN_FEATURES * N_PAD * 2        # W read
                        + B_pad * N_PAD * 4),            # out write
    )

    out = pl.pallas_call(
        linear_kernel,
        out_shape=jax.ShapeDtypeStruct((B_pad, N_PAD), jnp.float32),
        grid_spec=pltpu.PrefetchScalarGridSpec(
            num_scalar_prefetch=0,
            grid=grid,
            in_specs=[
                pl.BlockSpec((TM, IN_FEATURES), lambda i: (i, 0)),      # x: streamed
                pl.BlockSpec((IN_FEATURES, N_PAD), lambda i: (0, 0)),   # W: resident
                pl.BlockSpec((1, N_PAD), lambda i: (0, 0)),             # b: resident
            ],
            out_specs=pl.BlockSpec((TM, N_PAD), lambda i: (i, 0)),
        ),
        compiler_params=pltpu.CompilerParams(
            dimension_semantics=("parallel",),
        ),
        cost_estimate=cost,
    )(x, w_pad_bf16, b_pad_f32)

    # Strip batch padding and the lane padding on N.
    return out[:B, :OUT_FEATURES]


def init_params(key):
    # Deterministic init mimicking torch.nn.Linear default:
    # uniform(-1/sqrt(in_features), 1/sqrt(in_features)); weight shape (10, 1000).
    kw, kb = jax.random.split(key)
    bound = 1.0 / (IN_FEATURES ** 0.5)
    w = jax.random.uniform(kw, (OUT_FEATURES, IN_FEATURES), jnp.float32, -bound, bound)
    b = jax.random.uniform(kb, (OUT_FEATURES,), jnp.float32, -bound, bound)
    return w, b


def prep_params(w, b):
    """Pre-transpose + pad the PyTorch-layout params (done once, off hot path).

    w: (10, 1000) f32  ->  (1000, 128) bf16 (zero-padded, transposed)
    b: (10,)      f32  ->  (1, 128)    f32  (zero-padded)
    """
    w_t = w.T  # (1000, 10)
    w_pad = jnp.zeros((IN_FEATURES, N_PAD), jnp.float32)
    w_pad = w_pad.at[:, :OUT_FEATURES].set(w_t)
    w_pad = w_pad.astype(jnp.bfloat16)

    b_pad = jnp.zeros((1, N_PAD), jnp.float32)
    b_pad = b_pad.at[0, :OUT_FEATURES].set(b)
    return w_pad, b_pad


if __name__ == "__main__":
    key = jax.random.PRNGKey(0)
    k_x, k_p = jax.random.split(key)

    B = 8  # small batch for the demo
    x = jax.random.normal(k_x, (B, IN_FEATURES), jnp.float32)
    w, b = init_params(k_p)
    w_pad, b_pad = prep_params(w, b)

    out = linear_pallas(x, w_pad, b_pad)
    out = jax.block_until_ready(out)

    # Correctness check vs plain-JAX reference (bf16 matmul => loose tolerance).
    ref = x @ w.T + b
    assert out.shape == (B, OUT_FEATURES)
    assert jnp.allclose(out, ref, atol=2e-2, rtol=2e-2), (
        f"max abs err = {jnp.max(jnp.abs(out - ref))}"
    )

    print("KERNEL_OK")
</pallas_src>

<mosaic_0001>
module attributes {stable_mosaic.version = 11 : i64} {
  func.func @linear_kernel(%arg0: i32, %arg1: memref<8x1000xf32, #tpu.memory_space<vmem>>, %arg2: memref<1000x128xbf16, #tpu.memory_space<vmem>>, %arg3: memref<1x128xf32, #tpu.memory_space<vmem>>, %arg4: memref<8x128xf32, #tpu.memory_space<vmem>>) attributes {dimension_semantics = [#tpu.dimension_semantics<parallel>], iteration_bounds = array<i64: 1>, scalar_prefetch = 0 : i64, scratch_operands = 0 : i64, tpu.core_type = #tpu.core_type<tc>, window_params = [{transform_indices = @transform_0, window_bounds = array<i64: 8, 1000>}, {pipeline_mode = #tpu.pipeline_mode<synchronous>, transform_indices = @transform_1, window_bounds = array<i64: 1000, 128>}, {pipeline_mode = #tpu.pipeline_mode<synchronous>, transform_indices = @transform_2, window_bounds = array<i64: 1, 128>}, {transform_indices = @transform_3, window_bounds = array<i64: 8, 128>}]} {
    %c0 = arith.constant 0 : index
    %c0_0 = arith.constant 0 : index
    %0 = vector.load %arg1[%c0, %c0_0] : memref<8x1000xf32, #tpu.memory_space<vmem>>, vector<8x1000xf32>
    %1 = arith.truncf %0 : vector<8x1000xf32> to vector<8x1000xbf16>
    %c0_1 = arith.constant 0 : index
    %c0_2 = arith.constant 0 : index
    %2 = vector.load %arg2[%c0_1, %c0_2] : memref<1000x128xbf16, #tpu.memory_space<vmem>>, vector<1000x128xbf16>
    %cst = arith.constant dense<0.000000e+00> : vector<8x128xf32>
    %3 = tpu.matmul %1, %2, %cst {dimension_numbers = #tpu.dot_dimension_numbers<[1], [0], [0], [1], [0, 0, 1, 1], [], []>} : vector<8x1000xbf16>, vector<1000x128xbf16>, vector<8x128xf32> -> vector<8x128xf32>
    %c0_3 = arith.constant 0 : index
    %c0_4 = arith.constant 0 : index
    %4 = vector.load %arg3[%c0_3, %c0_4] : memref<1x128xf32, #tpu.memory_space<vmem>>, vector<1x128xf32>
    %5 = vector.broadcast %4 : vector<1x128xf32> to vector<8x128xf32>
    %6 = arith.addf %3, %5 : vector<8x128xf32>
    %c0_5 = arith.constant 0 : index
    %c0_6 = arith.constant 0 : index
    %7 = vector.load %arg4[%c0_5, %c0_6] : memref<8x128xf32, #tpu.memory_space<vmem>>, vector<8x128xf32>
    tpu.vector_store %arg4[%c0_5, %c0_6], %6 {strides = array<i32>} : memref<8x128xf32, #tpu.memory_space<vmem>>, vector<8x128xf32>,
    return
  }
  func.func @transform_0(%arg0: i32) -> (i32, i32) {
    %c0_i32 = arith.constant 0 : i32
    %c0_i32_0 = arith.constant 0 : i32
    return %arg0, %c0_i32 : i32, i32
  }
  func.func @transform_1(%arg0: i32) -> (i32, i32) {
    %c0_i32 = arith.constant 0 : i32
    %c0_i32_0 = arith.constant 0 : i32
    %c0_i32_1 = arith.constant 0 : i32
    return %c0_i32, %c0_i32_0 : i32, i32
  }
  func.func @transform_2(%arg0: i32) -> (i32, i32) {
    %c0_i32 = arith.constant 0 : i32
    %c0_i32_0 = arith.constant 0 : i32
    %c0_i32_1 = arith.constant 0 : i32
    return %c0_i32, %c0_i32_0 : i32, i32
  }
  func.func @transform_3(%arg0: i32) -> (i32, i32) {
    %c0_i32 = arith.constant 0 : i32
    %c0_i32_0 = arith.constant 0 : i32
    return %arg0, %c0_i32 : i32, i32
  }
}

</mosaic_0001>

<llo_original>
// kernel: tpu_custom_call.1
$region0: #{tpu_custom_call.1}
  #allocation0 [shape = 'u32[]', space=smem, size = 0x4, offset = 0x4, fixed_abs, tag = 'smem constant byte address 0x4 - core index']
  #allocation1 [shape = 'u32[144,128]{1,0:T(1,128)}', space=vmem, size = 0x12000, scoped, tag = 'internal scratch']
  %s0 = inlined_call_operand.hbm [shape: f32[8,1000], index: 0, kind: input, shape index: {}]
  %s1 = inlined_call_operand.hbm [shape: bf16[1000,128], index: 1, kind: input, shape index: {}]
  %s2 = inlined_call_operand.vmem [shape: f32[1,128], index: 2, kind: input, shape index: {}]
  %s3 = inlined_call_operand.hbm [shape: f32[8,128], index: 3, kind: output, shape index: {}]
  %s4 = sld [smem:[#allocation0]]
  $region30: #{tpu_custom_call.1} parent=0
    _
  %s6 = ssub.s32 1, %s4
  %s7 = scalar_select 0, %s6, %s4
  $region1: #{tpu_custom_call.1} parent=0
    #allocation2 [shape = 'u8[32768]{0}', space=vmem, size = 0x8000, scoped, tag = 'input window, operand 0, single buffered']
    #allocation3 [shape = 's32[1]{0}', space=sflag, size = 0x4, scoped, tag = 'scoped memory for tpu_custom_call.1']
    #allocation4 [shape = 's32[1]{0}', space=sflag, size = 0x4, scoped, tag = 'scoped memory for tpu_custom_call.1']
    #allocation5 [shape = 'u8[256000]{0}', space=vmem, size = 0x3e800, scoped, tag = 'input window, operand 1, single buffered']
    #allocation6 [shape = 's32[1]{0}', space=sflag, size = 0x4, scoped, tag = 'scoped memory for tpu_custom_call.1']
    #allocation7 [shape = 'u8[4096]{0}', space=vmem, size = 0x1000, scoped, tag = 'output window, operand 0, single buffered']
    %8 = vsyncpa [#allocation3], 0
    %9 = vsyncpa [#allocation6], 0
    %10 = vsyncpa [#allocation4], 0
    // Predicated region
    $region2: #{tpu_custom_call.1} parent=1 // pred_check
      _
    $region3: #{tpu_custom_call.1} parent=1 // pred_check_branch
      %12 = sbr.rel (0) target = $region5
    $region4: #{tpu_custom_call.1} parent=1 // pred_region
      %s14 = ssub.s32 1024, 1024
      %15 = vsyncadd [#allocation3], %s14
      %s17 = sshll.u32 [#allocation2], 4
      %s18 = int_to_ptr.vmem [resolvable:$true] %s17
      %20 = dma.hbm_to_vmem [thread:$0]  %s0, 1024, %s18, [#allocation3]
    $region5: #{tpu_custom_call.1} parent=1 // pred_fallthru
      _
    // Predicated region
    $region6: #{tpu_custom_call.1} parent=1 // pred_check
      _
    $region7: #{tpu_custom_call.1} parent=1 // pred_check_branch
      %22 = sbr.rel (0) target = $region9
    $region8: #{tpu_custom_call.1} parent=1 // pred_region
      %s24 = ssub.s32 8000, 8000
      %25 = vsyncadd [#allocation6], %s24
      %s26 = sshll.u32 [#allocation5], 4
      %s27 = int_to_ptr.vmem [resolvable:$true] %s26
      %32 = dma.hbm_to_vmem [thread:$0]  %s1, 8000, %s27, [#allocation6], 64, 64, 4
    $region9: #{tpu_custom_call.1} parent=1 // pred_fallthru
      _
    // Predicated region
    $region10: #{tpu_custom_call.1} parent=1 // pred_check
      _
    $region11: #{tpu_custom_call.1} parent=1 // pred_check_branch
      %34 = sbr.rel (0) target = $region13
    $region12: #{tpu_custom_call.1} parent=1 // pred_region
      _
    $region13: #{tpu_custom_call.1} parent=1 // pred_fallthru
      _
    // Predicated region
    $region14: #{tpu_custom_call.1} parent=1 // pred_check
      _
    $region15: #{tpu_custom_call.1} parent=1 // pred_check_branch
      %36 = sbr.rel (0) target = $region17
    $region16: #{tpu_custom_call.1} parent=1 // pred_region
      %37 = dma.done [#allocation3], 1024
    $region17: #{tpu_custom_call.1} parent=1 // pred_fallthru
      _
    // Predicated region
    $region18: #{tpu_custom_call.1} parent=1 // pred_check
      _
    $region19: #{tpu_custom_call.1} parent=1 // pred_check_branch
      %39 = sbr.rel (0) target = $region21
    $region20: #{tpu_custom_call.1} parent=1 // pred_region
      %40 = dma.done [#allocation6], 8000
    $region21: #{tpu_custom_call.1} parent=1 // pred_fallthru
      _
    %v42 = vld [vmem:[#allocation2] sm:$0xff]
    %v43 = vld [vmem:[#allocation2 + $0x8] sm:$0xff]
    %v44 = vld [vmem:[#allocation2 + $0x10] sm:$0xff]
    %v45 = vld [vmem:[#allocation2 + $0x18] sm:$0xff]
    %v46 = vld [vmem:[#allocation2 + $0x20] sm:$0xff]
    %v47 = vld [vmem:[#allocation2 + $0x28] sm:$0xff]
    %v48 = vld [vmem:[#allocation2 + $0x30] sm:$0xff]
    %v49 = vld [vmem:[#allocation2 + $0x38] sm:$0xff]
    %v50 = vpack.c.bf16 %v42, %v42
    %v51 = vpack.c.bf16 %v43, %v43
    %v52 = vpack.c.bf16 %v44, %v44
    %v53 = vpack.c.bf16 %v45, %v45
    %v54 = vpack.c.bf16 %v46, %v46
    %v55 = vpack.c.bf16 %v47, %v47
    %v56 = vpack.c.bf16 %v48, %v48
    %v57 = vpack.c.bf16 %v49, %v49
    %v58 = vld [vmem:[#allocation5] sm:$0xf]
    %v59 = vld [vmem:[#allocation5 + $0x4] sm:$0xf]
    %v60 = vld [vmem:[#allocation5 + $0x8] sm:$0xf]
    %v61 = vld [vmem:[#allocation5 + $0xc] sm:$0xf]
    %v62 = vld [vmem:[#allocation5 + $0x10] sm:$0xf]
    %v63 = vld [vmem:[#allocation5 + $0x14] sm:$0xf]
    %v64 = vld [vmem:[#allocation5 + $0x18] sm:$0xf]
    %v65 = vld [vmem:[#allocation5 + $0x1c] sm:$0xf]
    %v66 = vld [vmem:[#allocation5 + $0x20] sm:$0xf]
    %v67 = vld [vmem:[#allocation5 + $0x24] sm:$0xf]
    %v68 = vld [vmem:[#allocation5 + $0x28] sm:$0xf]
    %v69 = vld [vmem:[#allocation5 + $0x2c] sm:$0xf]
    %v70 = vld [vmem:[#allocation5 + $0x30] sm:$0xf]
    %v71 = vld [vmem:[#allocation5 + $0x34] sm:$0xf]
    %v72 = vld [vmem:[#allocation5 + $0x38] sm:$0xf]
    %v73 = vld [vmem:[#allocation5 + $0x3c] sm:$0xf]
    %v74 = vld [vmem:[#allocation5 + $0x40] sm:$0xf]
    %v75 = vld [vmem:[#allocation5 + $0x44] sm:$0xf]
    %v76 = vld [vmem:[#allocation5 + $0x48] sm:$0xf]
    %v77 = vld [vmem:[#allocation5 + $0x4c] sm:$0xf]
    %v78 = vld [vmem:[#allocation5 + $0x50] sm:$0xf]
    %v79 = vld [vmem:[#allocation5 + $0x54] sm:$0xf]
    %v80 = vld [vmem:[#allocation5 + $0x58] sm:$0xf]
    %v81 = vld [vmem:[#allocation5 + $0x5c] sm:$0xf]
    %v82 = vld [vmem:[#allocation5 + $0x60] sm:$0xf]
    %v83 = vld [vmem:[#allocation5 + $0x64] sm:$0xf]
    %v84 = vld [vmem:[#allocation5 + $0x68] sm:$0xf]
    %v85 = vld [vmem:[#allocation5 + $0x6c] sm:$0xf]
    %v86 = vld [vmem:[#allocation5 + $0x70] sm:$0xf]
    %v87 = vld [vmem:[#allocation5 + $0x74] sm:$0xf]
    %v88 = vld [vmem:[#allocation5 + $0x78] sm:$0xf]
    %v89 = vld [vmem:[#allocation5 + $0x7c] sm:$0xf]
    %v90 = vld [vmem:[#allocation5 + $0x80] sm:$0xf]
    %v91 = vld [vmem:[#allocation5 + $0x84] sm:$0xf]
    %v92 = vld [vmem:[#allocation5 + $0x88] sm:$0xf]
    %v93 = vld [vmem:[#allocation5 + $0x8c] sm:$0xf]
    %v94 = vld [vmem:[#allocation5 + $0x90] sm:$0xf]
    %v95 = vld [vmem:[#allocation5 + $0x94] sm:$0xf]
    %v96 = vld [vmem:[#allocation5 + $0x98] sm:$0xf]
    %v97 = vld [vmem:[#allocation5 + $0x9c] sm:$0xf]
    %v98 = vld [vmem:[#allocation5 + $0xa0] sm:$0xf]
    %v99 = vld [vmem:[#allocation5 + $0xa4] sm:$0xf]
    %v100 = vld [vmem:[#allocation5 + $0xa8] sm:$0xf]
    %v101 = vld [vmem:[#allocation5 + $0xac] sm:$0xf]
    %v102 = vld [vmem:[#allocation5 + $0xb0] sm:$0xf]
    %v103 = vld [vmem:[#allocation5 + $0xb4] sm:$0xf]
    %v104 = vld [vmem:[#allocation5 + $0xb8] sm:$0xf]
    %v105 = vld [vmem:[#allocation5 + $0xbc] sm:$0xf]
    %v106 = vld [vmem:[#allocation5 + $0xc0] sm:$0xf]
    %v107 = vld [vmem:[#allocation5 + $0xc4] sm:$0xf]
    %v108 = vld [vmem:[#allocation5 + $0xc8] sm:$0xf]
    %v109 = vld [vmem:[#allocation5 + $0xcc] sm:$0xf]
    %v110 = vld [vmem:[#allocation5 + $0xd0] sm:$0xf]
    %v111 = vld [vmem:[#allocation5 + $0xd4] sm:$0xf]
    %v112 = vld [vmem:[#allocation5 + $0xd8] sm:$0xf]
    %v113 = vld [vmem:[#allocation5 + $0xdc] sm:$0xf]
    %v114 = vld [vmem:[#allocation5 + $0xe0] sm:$0xf]
    %v115 = vld [vmem:[#allocation5 + $0xe4] sm:$0xf]
    %v116 = vld [vmem:[#allocation5 + $0xe8] sm:$0xf]
    %v117 = vld [vmem:[#allocation5 + $0xec] sm:$0xf]
    %v118 = vld [vmem:[#allocation5 + $0xf0] sm:$0xf]
    %v119 = vld [vmem:[#allocation5 + $0xf4] sm:$0xf]
    %v120 = vld [vmem:[#allocation5 + $0xf8] sm:$0xf]
    %v121 = vld [vmem:[#allocation5 + $0xfc] sm:$0xf]
    %v122 = vld [vmem:[#allocation5 + $0x100] sm:$0xf]
    %v123 = vld [vmem:[#allocation5 + $0x104] sm:$0xf]
    %v124 = vld [vmem:[#allocation5 + $0x108] sm:$0xf]
    %v125 = vld [vmem:[#allocation5 + $0x10c] sm:$0xf]
    %v126 = vld [vmem:[#allocation5 + $0x110] sm:$0xf]
    %v127 = vld [vmem:[#allocation5 + $0x114] sm:$0xf]
    %v128 = vld [vmem:[#allocation5 + $0x118] sm:$0xf]
    %v129 = vld [vmem:[#allocation5 + $0x11c] sm:$0xf]
    %v130 = vld [vmem:[#allocation5 + $0x120] sm:$0xf]
    %v131 = vld [vmem:[#allocation5 + $0x124] sm:$0xf]
    %v132 = vld [vmem:[#allocation5 + $0x128] sm:$0xf]
    %v133 = vld [vmem:[#allocation5 + $0x12c] sm:$0xf]
    %v134 = vld [vmem:[#allocation5 + $0x130] sm:$0xf]
    %v135 = vld [vmem:[#allocation5 + $0x134] sm:$0xf]
    %v136 = vld [vmem:[#allocation5 + $0x138] sm:$0xf]
    %v137 = vld [vmem:[#allocation5 + $0x13c] sm:$0xf]
    %v138 = vld [vmem:[#allocation5 + $0x140] sm:$0xf]
    %v139 = vld [vmem:[#allocation5 + $0x144] sm:$0xf]
    %v140 = vld [vmem:[#allocation5 + $0x148] sm:$0xf]
    %v141 = vld [vmem:[#allocation5 + $0x14c] sm:$0xf]
    %v142 = vld [vmem:[#allocation5 + $0x150] sm:$0xf]
    %v143 = vld [vmem:[#allocation5 + $0x154] sm:$0xf]
    %v144 = vld [vmem:[#allocation5 + $0x158] sm:$0xf]
    %v145 = vld [vmem:[#allocation5 + $0x15c] sm:$0xf]
    %v146 = vld [vmem:[#allocation5 + $0x160] sm:$0xf]
    %v147 = vld [vmem:[#allocation5 + $0x164] sm:$0xf]
    %v148 = vld [vmem:[#allocation5 + $0x168] sm:$0xf]
    %v149 = vld [vmem:[#allocation5 + $0x16c] sm:$0xf]
    %v150 = vld [vmem:[#allocation5 + $0x170] sm:$0xf]
    %v151 = vld [vmem:[#allocation5 + $0x174] sm:$0xf]
    %v152 = vld [vmem:[#allocation5 + $0x178] sm:$0xf]
    %v153 = vld [vmem:[#allocation5 + $0x17c] sm:$0xf]
    %v154 = vld [vmem:[#allocation5 + $0x180] sm:$0xf]
    %v155 = vld [vmem:[#allocation5 + $0x184] sm:$0xf]
    %v156 = vld [vmem:[#allocation5 + $0x188] sm:$0xf]
    %v157 = vld [vmem:[#allocation5 + $0x18c] sm:$0xf]
    %v158 = vld [vmem:[#allocation5 + $0x190] sm:$0xf]
    %v159 = vld [vmem:[#allocation5 + $0x194] sm:$0xf]
    %v160 = vld [vmem:[#allocation5 + $0x198] sm:$0xf]
    %v161 = vld [vmem:[#allocation5 + $0x19c] sm:$0xf]
    %v162 = vld [vmem:[#allocation5 + $0x1a0] sm:$0xf]
    %v163 = vld [vmem:[#allocation5 + $0x1a4] sm:$0xf]
    %v164 = vld [vmem:[#allocation5 + $0x1a8] sm:$0xf]
    %v165 = vld [vmem:[#allocation5 + $0x1ac] sm:$0xf]
    %v166 = vld [vmem:[#allocation5 + $0x1b0] sm:$0xf]
    %v167 = vld [vmem:[#allocation5 + $0x1b4] sm:$0xf]
    %v168 = vld [vmem:[#allocation5 + $0x1b8] sm:$0xf]
    %v169 = vld [vmem:[#allocation5 + $0x1bc] sm:$0xf]
    %v170 = vld [vmem:[#allocation5 + $0x1c0] sm:$0xf]
    %v171 = vld [vmem:[#allocation5 + $0x1c4] sm:$0xf]
    %v172 = vld [vmem:[#allocation5 + $0x1c8] sm:$0xf]
    %v173 = vld [vmem:[#allocation5 + $0x1cc] sm:$0xf]
    %v174 = vld [vmem:[#allocation5 + $0x1d0] sm:$0xf]
    %v175 = vld [vmem:[#allocation5 + $0x1d4] sm:$0xf]
    %v176 = vld [vmem:[#allocation5 + $0x1d8] sm:$0xf]
    %v177 = vld [vmem:[#allocation5 + $0x1dc] sm:$0xf]
    %v178 = vld [vmem:[#allocation5 + $0x1e0] sm:$0xf]
    %v179 = vld [vmem:[#allocation5 + $0x1e4] sm:$0xf]
    %v180 = vld [vmem:[#allocation5 + $0x1e8] sm:$0xf]
    %v181 = vld [vmem:[#allocation5 + $0x1ec] sm:$0xf]
    %v182 = vld [vmem:[#allocation5 + $0x1f0] sm:$0xf]
    %v183 = vld [vmem:[%s2] sm:$0x1]
    %v185 = vlaneseq
    %v186 = vshrl.u32 %v185, 7
    %v187 = vsub.s32 0, %v186
    %v188 = vrot.slane %v183, %v187
    %v315 = vunpack.c.l.b16 %v58
    %v316 = vunpack.c.l.b16 %v59
    %v317 = vunpack.c.l.b16 %v60
    %v318 = vunpack.c.l.b16 %v61
    %v319 = vunpack.c.l.b16 %v62
    %v320 = vunpack.c.l.b16 %v63
    %v321 = vunpack.c.l.b16 %v64
    %v322 = vunpack.c.l.b16 %v65
    %v323 = vunpack.c.l.b16 %v66
    %v324 = vunpack.c.l.b16 %v67
    %v325 = vunpack.c.l.b16 %v68
    %v326 = vunpack.c.l.b16 %v69
    %v327 = vunpack.c.l.b16 %v70
    %v328 = vunpack.c.l.b16 %v71
    %v329 = vunpack.c.l.b16 %v72
    %v330 = vunpack.c.l.b16 %v73
    %v331 = vunpack.c.l.b16 %v74
    %v332 = vunpack.c.l.b16 %v75
    %v333 = vunpack.c.l.b16 %v76
    %v334 = vunpack.c.l.b16 %v77
    %v335 = vunpack.c.l.b16 %v78
    %v336 = vunpack.c.l.b16 %v79
    %v337 = vunpack.c.l.b16 %v80
    %v338 = vunpack.c.l.b16 %v81
    %v339 = vunpack.c.l.b16 %v82
    %v340 = vunpack.c.l.b16 %v83
    %v341 = vunpack.c.l.b16 %v84
    %v342 = vunpack.c.l.b16 %v85
    %v343 = vunpack.c.l.b16 %v86
    %v344 = vunpack.c.l.b16 %v87
    %v345 = vunpack.c.l.b16 %v88
    %v346 = vunpack.c.l.b16 %v89
    %v347 = vunpack.c.l.b16 %v90
    %v348 = vunpack.c.l.b16 %v91
    %v349 = vunpack.c.l.b16 %v92
    %v350 = vunpack.c.l.b16 %v93
    %v351 = vunpack.c.l.b16 %v94
    %v352 = vunpack.c.l.b16 %v95
    %v353 = vunpack.c.l.b16 %v96
    %v354 = vunpack.c.l.b16 %v97
    %v355 = vunpack.c.l.b16 %v98
    %v356 = vunpack.c.l.b16 %v99
    %v357 = vunpack.c.l.b16 %v100
    %v358 = vunpack.c.l.b16 %v101
    %v359 = vunpack.c.l.b16 %v102
    %v360 = vunpack.c.l.b16 %v103
    %v361 = vunpack.c.l.b16 %v104
    %v362 = vunpack.c.l.b16 %v105
    %v363 = vunpack.c.l.b16 %v106
    %v364 = vunpack.c.l.b16 %v107
    %v365 = vunpack.c.l.b16 %v108
    %v366 = vunpack.c.l.b16 %v109
    %v367 = vunpack.c.l.b16 %v110
    %v368 = vunpack.c.l.b16 %v111
    %v369 = vunpack.c.l.b16 %v112
    %v370 = vunpack.c.l.b16 %v113
    %v371 = vunpack.c.l.b16 %v114
    %v372 = vunpack.c.l.b16 %v115
    %v373 = vunpack.c.l.b16 %v116
    %v374 = vunpack.c.l.b16 %v117
    %v375 = vunpack.c.l.b16 %v118
    %v376 = vunpack.c.l.b16 %v119
    %v377 = vunpack.c.l.b16 %v120
    %v378 = vunpack.c.l.b16 %v121
    %v379 = vunpack.c.l.b16 %v122
    %v380 = vunpack.c.l.b16 %v123
    %v381 = vunpack.c.l.b16 %v124
    %v382 = vunpack.c.l.b16 %v125
    %v383 = vunpack.c.l.b16 %v126
    %v384 = vunpack.c.l.b16 %v127
    %v385 = vunpack.c.l.b16 %v128
    %v386 = vunpack.c.l.b16 %v129
    %v387 = vunpack.c.l.b16 %v130
    %v388 = vunpack.c.l.b16 %v131
    %v389 = vunpack.c.l.b16 %v132
    %v390 = vunpack.c.l.b16 %v133
    %v391 = vunpack.c.l.b16 %v134
    %v392 = vunpack.c.l.b16 %v135
    %v393 = vunpack.c.l.b16 %v136
    %v394 = vunpack.c.l.b16 %v137
    %v395 = vunpack.c.l.b16 %v138
    %v396 = vunpack.c.l.b16 %v139
    %v397 = vunpack.c.l.b16 %v140
    %v398 = vunpack.c.l.b16 %v141
    %v399 = vunpack.c.l.b16 %v142
    %v400 = vunpack.c.l.b16 %v143
    %v401 = vunpack.c.l.b16 %v144
    %v402 = vunpack.c.l.b16 %v145
    %v403 = vunpack.c.l.b16 %v146
    %v404 = vunpack.c.l.b16 %v147
    %v405 = vunpack.c.l.b16 %v148
    %v406 = vunpack.c.l.b16 %v149
    %v407 = vunpack.c.l.b16 %v150
    %v408 = vunpack.c.l.b16 %v151
    %v409 = vunpack.c.l.b16 %v152
    %v410 = vunpack.c.l.b16 %v153
    %v411 = vunpack.c.l.b16 %v154
    %v412 = vunpack.c.l.b16 %v155
    %v413 = vunpack.c.l.b16 %v156
    %v414 = vunpack.c.l.b16 %v157
    %v415 = vunpack.c.l.b16 %v158
    %v416 = vunpack.c.l.b16 %v159
    %v417 = vunpack.c.l.b16 %v160
    %v418 = vunpack.c.l.b16 %v161
    %v419 = vunpack.c.l.b16 %v162
    %v420 = vunpack.c.l.b16 %v163
    %v421 = vunpack.c.l.b16 %v164
    %v422 = vunpack.c.l.b16 %v165
    %v423 = vunpack.c.l.b16 %v166
    %v424 = vunpack.c.l.b16 %v167
    %v425 = vunpack.c.l.b16 %v168
    %v426 = vunpack.c.l.b16 %v169
    %v427 = vunpack.c.l.b16 %v170
    %v428 = vunpack.c.l.b16 %v171
    %v429 = vunpack.c.l.b16 %v172
    %v430 = vunpack.c.l.b16 %v173
    %v431 = vunpack.c.l.b16 %v174
    %v432 = vunpack.c.l.b16 %v175
    %v433 = vunpack.c.l.b16 %v176
    %v434 = vunpack.c.l.b16 %v177
    %v435 = vunpack.c.l.b16 %v178
    %v436 = vunpack.c.l.b16 %v179
    %v437 = vunpack.c.l.b16 %v180
    %v438 = vunpack.c.l.b16 %v181
    %v439 = vunpack.c.l.b16 %v182
    %v440 = vpack.c.b16 %v316, %v315
    %v441 = vpack.c.b16 %v318, %v317
    %v442 = vpack.c.b16 %v320, %v319
    %v443 = vpack.c.b16 %v322, %v321
    %v444 = vpack.c.b16 %v324, %v323
    %v445 = vpack.c.b16 %v326, %v325
    %v446 = vpack.c.b16 %v328, %v327
    %v447 = vpack.c.b16 %v330, %v329
    %v448 = vpack.c.b16 %v332, %v331
    %v449 = vpack.c.b16 %v334, %v333
    %v450 = vpack.c.b16 %v336, %v335
    %v451 = vpack.c.b16 %v338, %v337
    %v452 = vpack.c.b16 %v340, %v339
    %v453 = vpack.c.b16 %v342, %v341
    %v454 = vpack.c.b16 %v344, %v343
    %v455 = vpack.c.b16 %v346, %v345
    %v456 = vpack.c.b16 %v348, %v347
    %v457 = vpack.c.b16 %v350, %v349
    %v458 = vpack.c.b16 %v352, %v351
    %v459 = vpack.c.b16 %v354, %v353
    %v460 = vpack.c.b16 %v356, %v355
    %v461 = vpack.c.b16 %v358, %v357
    %v462 = vpack.c.b16 %v360, %v359
    %v463 = vpack.c.b16 %v362, %v361
    %v464 = vpack.c.b16 %v364, %v363
    %v465 = vpack.c.b16 %v366, %v365
    %v466 = vpack.c.b16 %v368, %v367
    %v467 = vpack.c.b16 %v370, %v369
    %v468 = vpack.c.b16 %v372, %v371
    %v469 = vpack.c.b16 %v374, %v373
    %v470 = vpack.c.b16 %v376, %v375
    %v471 = vpack.c.b16 %v378, %v377
    %v472 = vpack.c.b16 %v380, %v379
    %v473 = vpack.c.b16 %v382, %v381
    %v474 = vpack.c.b16 %v384, %v383
    %v475 = vpack.c.b16 %v386, %v385
    %v476 = vpack.c.b16 %v388, %v387
    %v477 = vpack.c.b16 %v390, %v389
    %v478 = vpack.c.b16 %v392, %v391
    %v479 = vpack.c.b16 %v394, %v393
    %v480 = vpack.c.b16 %v396, %v395
    %v481 = vpack.c.b16 %v398, %v397
    %v482 = vpack.c.b16 %v400, %v399
    %v483 = vpack.c.b16 %v402, %v401
    %v484 = vpack.c.b16 %v404, %v403
    %v485 = vpack.c.b16 %v406, %v405
    %v486 = vpack.c.b16 %v408, %v407
    %v487 = vpack.c.b16 %v410, %v409
    %v488 = vpack.c.b16 %v412, %v411
    %v489 = vpack.c.b16 %v414, %v413
    %v490 = vpack.c.b16 %v416, %v415
    %v491 = vpack.c.b16 %v418, %v417
    %v492 = vpack.c.b16 %v420, %v419
    %v493 = vpack.c.b16 %v422, %v421
    %v494 = vpack.c.b16 %v424, %v423
    %v495 = vpack.c.b16 %v426, %v425
    %v496 = vpack.c.b16 %v428, %v427
    %v497 = vpack.c.b16 %v430, %v429
    %v498 = vpack.c.b16 %v432, %v431
    %v499 = vpack.c.b16 %v434, %v433
    %v500 = vpack.c.b16 %v436, %v435
    %v501 = vpack.c.b16 %v438, %v437
    %v502 = vpack.c.b16 %v439, %v439
    %vm565 = vcmask 850944
    %v567 = vsel %vm565, %v57, 0
    %vm569 = vcmask 1043456
    %v571 = vsel %vm569, %v502, 0
    %573 = vmatprep.subr.bf16.mxu0 0
    %574 = vmatpush1.bf16.msra.mxu0 %v440
    %575 = vmatprep.subr.bf16.mxu0 0
    %576 = vmatpush1.bf16.msra.mxu0 %v441
    %577 = vmatprep.subr.bf16.mxu0 0
    %578 = vmatpush1.bf16.msra.mxu0 %v442
    %579 = vmatprep.subr.bf16.mxu0 0
    %580 = vmatpush1.bf16.msra.mxu0 %v443
    %581 = vmatprep.subr.bf16.mxu0 0
    %582 = vmatpush1.bf16.msra.mxu0 %v444
    %583 = vmatprep.subr.bf16.mxu0 0
    %584 = vmatpush1.bf16.msra.mxu0 %v445
    %585 = vmatprep.subr.bf16.mxu0 0
    %586 = vmatpush1.bf16.msra.mxu0 %v446
    %587 = vmatprep.subr.bf16.mxu0 0
    %588 = vmatpush1.bf16.msra.mxu0 %v447
    %589 = vmatprep.subr.bf16.mxu0 0
    %590 = vmatpush1.bf16.msra.mxu0 %v448
    %591 = vmatprep.subr.bf16.mxu0 0
    %592 = vmatpush1.bf16.msra.mxu0 %v449
    %593 = vmatprep.subr.bf16.mxu0 0
    %594 = vmatpush1.bf16.msra.mxu0 %v450
    %595 = vmatprep.subr.bf16.mxu0 0
    %596 = vmatpush1.bf16.msra.mxu0 %v451
    %597 = vmatprep.subr.bf16.mxu0 0
    %598 = vmatpush1.bf16.msra.mxu0 %v452
    %599 = vmatprep.subr.bf16.mxu0 0
    %600 = vmatpush1.bf16.msra.mxu0 %v453
    %601 = vmatprep.subr.bf16.mxu0 0
    %602 = vmatpush1.bf16.msra.mxu0 %v454
    %603 = vmatprep.subr.bf16.mxu0 0
    %604 = vmatpush1.bf16.msra.mxu0 %v455
    %605 = vmatprep.mubr.bf16.mxu0 %v51
    %606 = vmatmul.mubr.bf16.gmra.mrb[0].mxu0 %v50
    %v607 = vpop.f32.mrb[0].mxu0
    %v608 = vadd.f32 %v188, %v607
    %v609 = vpop.f32.mrb[0].mxu0
    %v610 = vpop.f32.mrb[0].mxu0
    %v611 = vpop.f32.mrb[0].mxu0
    %612 = vdwg.mxu0
    %613 = vmatprep.subr.bf16.mxu0 0
    %614 = vmatpush1.bf16.msra.mxu0 %v456
    %615 = vmatprep.subr.bf16.mxu0 0
    %616 = vmatpush1.bf16.msra.mxu0 %v457
    %617 = vmatprep.subr.bf16.mxu0 0
    %618 = vmatpush1.bf16.msra.mxu0 %v458
    %619 = vmatprep.subr.bf16.mxu0 0
    %620 = vmatpush1.bf16.msra.mxu0 %v459
    %621 = vmatprep.subr.bf16.mxu0 0
    %622 = vmatpush1.bf16.msra.mxu0 %v460
    %623 = vmatprep.subr.bf16.mxu0 0
    %624 = vmatpush1.bf16.msra.mxu0 %v461
    %625 = vmatprep.subr.bf16.mxu0 0
    %626 = vmatpush1.bf16.msra.mxu0 %v462
    %627 = vmatprep.subr.bf16.mxu0 0
    %628 = vmatpush1.bf16.msra.mxu0 %v463
    %629 = vmatprep.subr.bf16.mxu0 0
    %630 = vmatpush1.bf16.msra.mxu0 %v464
    %631 = vmatprep.subr.bf16.mxu0 0
    %632 = vmatpush1.bf16.msra.mxu0 %v465
    %633 = vmatprep.subr.bf16.mxu0 0
    %634 = vmatpush1.bf16.msra.mxu0 %v466
    %635 = vmatprep.subr.bf16.mxu0 0
    %636 = vmatpush1.bf16.msra.mxu0 %v467
    %637 = vmatprep.subr.bf16.mxu0 0
    %638 = vmatpush1.bf16.msra.mxu0 %v468
    %639 = vmatprep.subr.bf16.mxu0 0
    %640 = vmatpush1.bf16.msra.mxu0 %v469
    %641 = vmatprep.subr.bf16.mxu0 0
    %642 = vmatpush1.bf16.msra.mxu0 %v470
    %643 = vmatprep.subr.bf16.mxu0 0
    %644 = vmatpush1.bf16.msra.mxu0 %v471
    %645 = vmatprep.mubr.bf16.mxu0 %v53
    %646 = vmatmul.mubr.bf16.gmra.mrb[0].mxu0 %v52
    %v647 = vpop.f32.mrb[0].mxu0
    %v648 = vadd.f32 %v608, %v647
    %v649 = vpop.f32.mrb[0].mxu0
    %v650 = vpop.f32.mrb[0].mxu0
    %v651 = vpop.f32.mrb[0].mxu0
    %652 = vdwg.mxu0
    %653 = vmatprep.subr.bf16.mxu0 0
    %654 = vmatpush1.bf16.msra.mxu0 %v472
    %655 = vmatprep.subr.bf16.mxu0 0
    %656 = vmatpush1.bf16.msra.mxu0 %v473
    %657 = vmatprep.subr.bf16.mxu0 0
    %658 = vmatpush1.bf16.msra.mxu0 %v474
    %659 = vmatprep.subr.bf16.mxu0 0
    %660 = vmatpush1.bf16.msra.mxu0 %v475
    %661 = vmatprep.subr.bf16.mxu0 0
    %662 = vmatpush1.bf16.msra.mxu0 %v476
    %663 = vmatprep.subr.bf16.mxu0 0
    %664 = vmatpush1.bf16.msra.mxu0 %v477
    %665 = vmatprep.subr.bf16.mxu0 0
    %666 = vmatpush1.bf16.msra.mxu0 %v478
    %667 = vmatprep.subr.bf16.mxu0 0
    %668 = vmatpush1.bf16.msra.mxu0 %v479
    %669 = vmatprep.subr.bf16.mxu0 0
    %670 = vmatpush1.bf16.msra.mxu0 %v480
    %671 = vmatprep.subr.bf16.mxu0 0
    %672 = vmatpush1.bf16.msra.mxu0 %v481
    %673 = vmatprep.subr.bf16.mxu0 0
    %674 = vmatpush1.bf16.msra.mxu0 %v482
    %675 = vmatprep.subr.bf16.mxu0 0
    %676 = vmatpush1.bf16.msra.mxu0 %v483
    %677 = vmatprep.subr.bf16.mxu0 0
    %678 = vmatpush1.bf16.msra.mxu0 %v484
    %679 = vmatprep.subr.bf16.mxu0 0
    %680 = vmatpush1.bf16.msra.mxu0 %v485
    %681 = vmatprep.subr.bf16.mxu0 0
    %682 = vmatpush1.bf16.msra.mxu0 %v486
    %683 = vmatprep.subr.bf16.mxu0 0
    %684 = vmatpush1.bf16.msra.mxu0 %v487
    %685 = vmatprep.mubr.bf16.mxu0 %v55
    %686 = vmatmul.mubr.bf16.gmra.mrb[0].mxu0 %v54
    %v687 = vpop.f32.mrb[0].mxu0
    %v688 = vadd.f32 %v648, %v687
    %v689 = vpop.f32.mrb[0].mxu0
    %v690 = vpop.f32.mrb[0].mxu0
    %v691 = vpop.f32.mrb[0].mxu0
    %692 = vdwg.mxu0
    %693 = vmatprep.subr.bf16.mxu0 0
    %694 = vmatpush1.bf16.msra.mxu0 %v488
    %695 = vmatprep.subr.bf16.mxu0 0
    %696 = vmatpush1.bf16.msra.mxu0 %v489
    %697 = vmatprep.subr.bf16.mxu0 0
    %698 = vmatpush1.bf16.msra.mxu0 %v490
    %699 = vmatprep.subr.bf16.mxu0 0
    %700 = vmatpush1.bf16.msra.mxu0 %v491
    %701 = vmatprep.subr.bf16.mxu0 0
    %702 = vmatpush1.bf16.msra.mxu0 %v492
    %703 = vmatprep.subr.bf16.mxu0 0
    %704 = vmatpush1.bf16.msra.mxu0 %v493
    %705 = vmatprep.subr.bf16.mxu0 0
    %706 = vmatpush1.bf16.msra.mxu0 %v494
    %707 = vmatprep.subr.bf16.mxu0 0
    %708 = vmatpush1.bf16.msra.mxu0 %v495
    %709 = vmatprep.subr.bf16.mxu0 0
    %710 = vmatpush1.bf16.msra.mxu0 %v496
    %711 = vmatprep.subr.bf16.mxu0 0
    %712 = vmatpush1.bf16.msra.mxu0 %v497
    %713 = vmatprep.subr.bf16.mxu0 0
    %714 = vmatpush1.bf16.msra.mxu0 %v498
    %715 = vmatprep.subr.bf16.mxu0 0
    %716 = vmatpush1.bf16.msra.mxu0 %v499
    %717 = vmatprep.subr.bf16.mxu0 0
    %718 = vmatpush1.bf16.msra.mxu0 %v500
    %719 = vmatprep.subr.bf16.mxu0 0
    %720 = vmatpush1.bf16.msra.mxu0 %v501
    %721 = vmatprep.subr.bf16.mxu0 0
    %722 = vmatpush1.bf16.msra.mxu0 %v571
    %723 = vmatprep.subr.bf16.mxu0 0
    %724 = vmatpush1.bf16.msra.mxu0 0
    %725 = vmatprep.mubr.bf16.mxu0 %v567
    %726 = vmatmul.mubr.bf16.gmra.mrb[0].mxu0 %v56
    %v727 = vpop.f32.mrb[0].mxu0
    %v728 = vadd.f32 %v688, %v727
    %v729 = vpop.f32.mrb[0].mxu0
    %v730 = vpop.f32.mrb[0].mxu0
    %v731 = vpop.f32.mrb[0].mxu0
    %732 = vdwg.mxu0
    %733 = vst [vmem:[#allocation7] sm:$0xff] %v728
    // Predicated region
    $region22: #{tpu_custom_call.1} parent=1 // pred_check
      _
    $region23: #{tpu_custom_call.1} parent=1 // pred_check_branch
      %735 = sbr.rel (0) target = $region25
    $region24: #{tpu_custom_call.1} parent=1 // pred_region
      %s737 = ssub.s32 128, 128
      %738 = vsyncadd [#allocation4], %s737
      %s740 = sshll.u32 [#allocation7], 4
      %s741 = int_to_ptr.vmem [resolvable:$true] %s740
      %743 = dma.vmem_to_hbm [thread:$0]  %s741, 128, %s3, [#allocation4]
    $region25: #{tpu_custom_call.1} parent=1 // pred_fallthru
      _
    // Predicated region
    $region26: #{tpu_custom_call.1} parent=1 // pred_check
      _
    $region27: #{tpu_custom_call.1} parent=1 // pred_check_branch
      %745 = sbr.rel (0) target = $region29
    $region28: #{tpu_custom_call.1} parent=1 // pred_region
      %746 = dma.done [#allocation4], 128
    $region29: #{tpu_custom_call.1} parent=1 // pred_fallthru
      _
    %747 = vsyncpa [#allocation3], 1
    %748 = vsyncpa [#allocation6], 1
    %749 = vsyncpa [#allocation4], 1

</llo_original>
